<compile_context>
chip_gen: v7x
topology: tpu7x:2x2x1
jax: 0.10.0
libtpu: 0.0.40
codegen_flags: <defaults>
</compile_context>

<pallas_src>
import jax
import jax.numpy as jnp
from jax.experimental import pallas as pl
from jax.experimental.pallas import tpu as pltpu


# ----------------------------------------------------------------------------
# Plain-JAX Huber-sum helper (used for tails, tiny inputs, and as reference).
# ----------------------------------------------------------------------------
def _huber_sum_f32(s, t):
    """Sum of smooth-L1 (Huber, beta=1) terms, accumulated in f32."""
    d = s.astype(jnp.float32) - t.astype(jnp.float32)
    ad = jnp.abs(d)
    c = jnp.minimum(ad, jnp.float32(1.0))
    return jnp.sum(c * (ad - 0.5 * c))


# ----------------------------------------------------------------------------
# Pallas streaming reduction.
# ----------------------------------------------------------------------------
def smooth_l1_loss_mean(s_score, t_score, *, max_row_tile=4096, num_splits=1,
                        min_pallas_elems=128 * 1024):
    """Mean-reduced smooth-L1 (Huber, beta=1) loss.

    Large inputs stream through a Pallas reduction kernel; tiny inputs and the
    non-tile-aligned tails use a fused XLA elementwise+reduce.
    num_splits: keep 1 on single-TC v5e/v6e; 2 shards the stream on v7x.
    """
    assert s_score.shape == t_score.shape
    total = int(s_score.size)
    lanes = 128

    flat_s = jnp.ravel(s_score)          # contiguous reshape: no HBM copy
    flat_t = jnp.ravel(t_score)

    rem = total % lanes                  # sub-128 lane remainder
    main_len = total - rem
    m_rows = main_len // lanes           # full 128-wide rows
    tile_m = min(max_row_tile, (m_rows // 8) * 8)
    num_blocks = (m_rows // tile_m) if tile_m >= 8 else 0

    # Small-input / degenerate fallback: fixed pallas_call launch + grid
    # overhead dominates below ~0.5 MiB; fused XLA wins there.
    if total < min_pallas_elems or num_blocks == 0:
        return _huber_sum_f32(flat_s, flat_t) / jnp.float32(total)

    # Copy-free 2-D view of the 128-aligned prefix.
    if rem == 0:
        s2 = flat_s.reshape(m_rows, lanes)       # pure reshape, no copy
        t2 = flat_t.reshape(m_rows, lanes)
    else:
        # TODO(synk): a non-128-multiple element count still forces one bulk
        # prefix-slice copy; rare for score tensors, tails handled below.
        s2 = flat_s[:main_len].reshape(m_rows, lanes)
        t2 = flat_t[:main_len].reshape(m_rows, lanes)

    steps = -(-num_blocks // num_splits)             # reduction steps / split
    needs_gate = (num_splits * steps != num_blocks)  # uneven split coverage
    m_main = num_blocks * tile_m                     # rows covered by the grid

    # VMEM budget (f32 worst case): 2 inputs x 2 buffers x tile_m*128*4 B
    # = 8 MiB at tile_m=4096 -> within default scoped VMEM on all generations.

    def in_idx(p, k):
        b = p * steps + k
        if needs_gate:
            b = jnp.minimum(b, num_blocks - 1)       # clamp; gated off below
        return (b, 0)

    def kernel(s_ref, t_ref, out_ref, acc_ref):
        p = pl.program_id(0)
        k = pl.program_id(1)

        @pl.when(k == 0)
        def _init():
            acc_ref[...] = jnp.zeros_like(acc_ref)

        def accumulate():
            d = s_ref[...].astype(jnp.float32) - t_ref[...].astype(jnp.float32)
            ad = jnp.abs(d)
            # Branch-free Huber (beta=1): min(|d|,1) * (|d| - 0.5*min(|d|,1)).
            c = jnp.minimum(ad, 1.0)
            elem = c * (ad - 0.5 * c)
            # Tile-aligned fold to a vreg-shaped (8,128) partial: pure VPU adds.
            acc_ref[...] += elem.reshape(tile_m // 8, 8, lanes).sum(axis=0)

        if needs_gate:
            pl.when(p * steps + k < num_blocks)(accumulate)
        else:
            accumulate()

        # Store the accumulator exactly once per split (unmasked, lane-dense).
        @pl.when(k == steps - 1)
        def _finalize():
            out_ref[...] = acc_ref[...]

    partials = pl.pallas_call(
        kernel,
        out_shape=jax.ShapeDtypeStruct((num_splits * 8, lanes), jnp.float32),
        grid_spec=pltpu.PrefetchScalarGridSpec(
            num_scalar_prefetch=0,
            grid=(num_splits, steps),
            in_specs=[
                pl.BlockSpec((tile_m, lanes), in_idx),
                pl.BlockSpec((tile_m, lanes), in_idx),
            ],
            out_specs=pl.BlockSpec((8, lanes), lambda p, k: (p, 0)),
            scratch_shapes=[pltpu.VMEM((8, lanes), jnp.float32)],
        ),
        compiler_params=pltpu.CompilerParams(
            dimension_semantics=("parallel", "arbitrary"),
        ),
    )(s2, t2)

    pieces = [jnp.sum(partials)]
    if m_rows > m_main:   # row tail not covered by the grid (< tile_m rows)
        pieces.append(_huber_sum_f32(s2[m_main:], t2[m_main:]))
    if rem:               # sub-128 lane remainder
        pieces.append(_huber_sum_f32(flat_s[main_len:], flat_t[main_len:]))

    return sum(pieces) / jnp.float32(total)


# ----------------------------------------------------------------------------
# Scalar glue reproducing HuberLoss.forward semantics.
# ----------------------------------------------------------------------------
def _norm_scalar(x):
    """Bring positive x into [1, 10); closed form of the module's `norm`.

    Equivalent to the repeated *10 / /10 loop for x > 0.  The PyTorch loop
    never terminates for x <= 0, so we define norm(x<=0) = 1.0.
    """
    # TODO(synk): PyTorch `norm` hangs for x <= 0; we return 1.0 in that case.
    safe = jnp.where(x > 0.0, x, jnp.float32(1.0))
    e = jnp.floor(jnp.log10(safe))
    y = safe * jnp.power(jnp.float32(10.0), -e)
    y = jnp.where(y >= 10.0, y / 10.0, y)   # guard decade-boundary rounding
    y = jnp.where(y < 1.0, y * 10.0, y)
    return jnp.where(x > 0.0, y, jnp.float32(1.0))


class HuberLossPallas:
    def __init__(self, l):
        self.l = jnp.float32(l)

    def forward(self, t_score, s_score, loss_res, half_epoch):
        loss_res = jnp.asarray(loss_res, dtype=jnp.float32)

        t_loss_res = smooth_l1_loss_mean(s_score, t_score)
        # Scalar nan/inf guard (mirrors the original: zero the loss if the
        # reduced value is non-finite).
        t_loss_res = jnp.where(jnp.isfinite(t_loss_res), t_loss_res,
                               jnp.float32(0.0))

        if not half_epoch:
            loss_cmp = _norm_scalar(t_loss_res * loss_res)
        else:
            loss_cmp = jnp.float32(1.0)

        soft_loss = self.l / loss_cmp * t_loss_res
        loss = soft_loss + loss_res
        # Keep device scalars (original uses .item(); avoided to not force a
        # host sync / break jit).
        loss_record = {"soft_loss": soft_loss, "total_loss": loss}
        return loss, loss_record

    __call__ = forward


# ----------------------------------------------------------------------------
# Demo / smoke test
# ----------------------------------------------------------------------------
if __name__ == "__main__":
    key = jax.random.PRNGKey(0)
    k1, k2, k3, k4, k5, k6 = jax.random.split(key, 6)

    def ref_huber_mean(s, t):
        d = s.astype(jnp.float32) - t.astype(jnp.float32)
        ad = jnp.abs(d)
        return jnp.mean(jnp.where(ad < 1.0, 0.5 * d * d, ad - 0.5))

    # 1) Force the Pallas kernel on a small aligned shape (64x256 scores).
    t_a = jax.random.normal(k1, (64, 256), dtype=jnp.float32)
    s_a = jax.random.normal(k2, (64, 256), dtype=jnp.float32) * 2.0
    got_a = smooth_l1_loss_mean(s_a, t_a, min_pallas_elems=0)
    assert jnp.allclose(ref_huber_mean(s_a, t_a), got_a, rtol=1e-5, atol=1e-6), \
        (ref_huber_mean(s_a, t_a), got_a)

    # 2) Ragged shape (total % 128 != 0): exercises kernel + both JAX tails.
    t_b = jax.random.normal(k3, (37, 100), dtype=jnp.float32)
    s_b = jax.random.normal(k4, (37, 100), dtype=jnp.float32)
    got_b = smooth_l1_loss_mean(s_b, t_b, min_pallas_elems=0)
    assert jnp.allclose(ref_huber_mean(s_b, t_b), got_b, rtol=1e-5, atol=1e-6), \
        (ref_huber_mean(s_b, t_b), got_b)

    # 3) bf16 inputs (native-dtype streaming, f32 upcast on the VPU).
    s_c, t_c = s_a.astype(jnp.bfloat16), t_a.astype(jnp.bfloat16)
    got_c = smooth_l1_loss_mean(s_c, t_c, min_pallas_elems=0)
    assert jnp.allclose(ref_huber_mean(s_c, t_c), got_c, rtol=1e-3, atol=1e-4), \
        (ref_huber_mean(s_c, t_c), got_c)

    # 4) num_splits=2 configuration (v7x two-core layout) — gated/clamped path.
    got_d = smooth_l1_loss_mean(s_a, t_a, min_pallas_elems=0, num_splits=2)
    assert jnp.allclose(ref_huber_mean(s_a, t_a), got_d, rtol=1e-5, atol=1e-6), \
        (ref_huber_mean(s_a, t_a), got_d)

    # 5) Full module forward (small scores take the fused-XLA fallback path).
    t_score = jax.random.normal(k5, (8, 128), dtype=jnp.float32)
    s_score = jax.random.normal(k6, (8, 128), dtype=jnp.float32) * 2.0
    loss_res = jnp.float32(0.37)
    module = HuberLossPallas(l=0.5)
    loss_a, rec_a = module(t_score, s_score, loss_res, half_epoch=False)
    loss_b, rec_b = module(t_score, s_score, loss_res, half_epoch=True)

    jax.block_until_ready((got_a, got_b, got_c, got_d, loss_a, loss_b))
    print("KERNEL_OK")
</pallas_src>

<mosaic_0001>
module attributes {stable_mosaic.version = 11 : i64} {
  func.func @kernel(%arg0: i32, %arg1: i32, %arg2: memref<128x128xf32, #tpu.memory_space<vmem>>, %arg3: memref<128x128xf32, #tpu.memory_space<vmem>>, %arg4: memref<8x128xf32, #tpu.memory_space<vmem>>, %arg5: memref<8x128xf32, #tpu.memory_space<vmem>>) attributes {dimension_semantics = [#tpu.dimension_semantics<parallel>, #tpu.dimension_semantics<arbitrary>], iteration_bounds = array<i64: 1, 1>, scalar_prefetch = 0 : i64, scratch_operands = 1 : i64, tpu.core_type = #tpu.core_type<tc>, window_params = [{transform_indices = @transform_0, window_bounds = array<i64: 128, 128>}, {transform_indices = @transform_1, window_bounds = array<i64: 128, 128>}, {transform_indices = @transform_2, window_bounds = array<i64: 8, 128>}]} {
    %c0_i32 = arith.constant 0 : i32
    %0 = arith.cmpi eq, %arg1, %c0_i32 : i32
    %1 = arith.extui %0 : i1 to i32
    %c0_i32_0 = arith.constant 0 : i32
    %2 = arith.cmpi ne, %1, %c0_i32_0 : i32
    scf.if %2 {
      %cst_12 = arith.constant 0.000000e+00 : f32
      %21 = vector.broadcast %cst_12 : f32 to vector<8x128xf32>
      %c0_13 = arith.constant 0 : index
      %c0_14 = arith.constant 0 : index
      %22 = vector.load %arg5[%c0_13, %c0_14] : memref<8x128xf32, #tpu.memory_space<vmem>>, vector<8x128xf32>
      tpu.vector_store %arg5[%c0_13, %c0_14], %21 {strides = array<i32>} : memref<8x128xf32, #tpu.memory_space<vmem>>, vector<8x128xf32>,
    } else {
    }
    %c0 = arith.constant 0 : index
    %c0_1 = arith.constant 0 : index
    %3 = vector.load %arg2[%c0, %c0_1] : memref<128x128xf32, #tpu.memory_space<vmem>>, vector<128x128xf32>
    %c0_2 = arith.constant 0 : index
    %c0_3 = arith.constant 0 : index
    %4 = vector.load %arg3[%c0_2, %c0_3] : memref<128x128xf32, #tpu.memory_space<vmem>>, vector<128x128xf32>
    %5 = arith.subf %3, %4 : vector<128x128xf32>
    %6 = math.absf %5 : vector<128x128xf32>
    %cst = arith.constant 1.000000e+00 : f32
    %7 = vector.broadcast %cst : f32 to vector<128x128xf32>
    %8 = arith.minimumf %6, %7 : vector<128x128xf32>
    %cst_4 = arith.constant 5.000000e-01 : f32
    %9 = vector.broadcast %cst_4 : f32 to vector<128x128xf32>
    %10 = arith.mulf %9, %8 : vector<128x128xf32>
    %11 = arith.subf %6, %10 : vector<128x128xf32>
    %12 = arith.mulf %8, %11 : vector<128x128xf32>
    %c0_5 = arith.constant 0 : index
    %c0_6 = arith.constant 0 : index
    %13 = vector.load %arg5[%c0_5, %c0_6] : memref<8x128xf32, #tpu.memory_space<vmem>>, vector<8x128xf32>
    %14 = vector.shape_cast %12 : vector<128x128xf32> to vector<16x8x128xf32>
    %cst_7 = arith.constant dense<0.000000e+00> : vector<8x128xf32>
    %15 = vector.multi_reduction <add>, %14, %cst_7 [0] : vector<16x8x128xf32> to vector<8x128xf32>
    %16 = arith.addf %13, %15 : vector<8x128xf32>
    %c0_8 = arith.constant 0 : index
    %c0_9 = arith.constant 0 : index
    %17 = vector.load %arg5[%c0_8, %c0_9] : memref<8x128xf32, #tpu.memory_space<vmem>>, vector<8x128xf32>
    tpu.vector_store %arg5[%c0_8, %c0_9], %16 {strides = array<i32>} : memref<8x128xf32, #tpu.memory_space<vmem>>, vector<8x128xf32>,
    %c0_i32_10 = arith.constant 0 : i32
    %18 = arith.cmpi eq, %arg1, %c0_i32_10 : i32
    %19 = arith.extui %18 : i1 to i32
    %c0_i32_11 = arith.constant 0 : i32
    %20 = arith.cmpi ne, %19, %c0_i32_11 : i32
    scf.if %20 {
      %c0_12 = arith.constant 0 : index
      %c0_13 = arith.constant 0 : index
      %21 = vector.load %arg5[%c0_12, %c0_13] : memref<8x128xf32, #tpu.memory_space<vmem>>, vector<8x128xf32>
      %c0_14 = arith.constant 0 : index
      %c0_15 = arith.constant 0 : index
      %22 = vector.load %arg4[%c0_14, %c0_15] : memref<8x128xf32, #tpu.memory_space<vmem>>, vector<8x128xf32>
      tpu.vector_store %arg4[%c0_14, %c0_15], %21 {strides = array<i32>} : memref<8x128xf32, #tpu.memory_space<vmem>>, vector<8x128xf32>,
    } else {
    }
    return
  }
  func.func @transform_0(%arg0: i32, %arg1: i32) -> (i32, i32) {
    %c1_i32 = arith.constant 1 : i32
    %0 = arith.muli %arg0, %c1_i32 : i32
    %1 = arith.addi %0, %arg1 : i32
    %c0_i32 = arith.constant 0 : i32
    %c0_i32_0 = arith.constant 0 : i32
    return %1, %c0_i32 : i32, i32
  }
  func.func @transform_1(%arg0: i32, %arg1: i32) -> (i32, i32) {
    %c1_i32 = arith.constant 1 : i32
    %0 = arith.muli %arg0, %c1_i32 : i32
    %1 = arith.addi %0, %arg1 : i32
    %c0_i32 = arith.constant 0 : i32
    %c0_i32_0 = arith.constant 0 : i32
    return %1, %c0_i32 : i32, i32
  }
  func.func @transform_2(%arg0: i32, %arg1: i32) -> (i32, i32) {
    %c0_i32 = arith.constant 0 : i32
    %c0_i32_0 = arith.constant 0 : i32
    return %arg0, %c0_i32 : i32, i32
  }
}

</mosaic_0001>

<llo_original>
// kernel: tpu_custom_call.1
$region0: #{tpu_custom_call.1}
  #allocation0 [shape = 'u32[]', space=smem, size = 0x4, offset = 0x4, fixed_abs, tag = 'smem constant byte address 0x4 - core index']
  #allocation1 [shape = 'u32[144,128]{1,0:T(1,128)}', space=vmem, size = 0x12000, scoped, tag = 'internal scratch']
  #allocation2 [shape = 'f32[8,128]{1,0:T(8,128)}', space=vmem, size = 0x1000, scoped, tag = 'scratch operand']
  %s0 = inlined_call_operand.hbm [shape: f32[128,128], index: 0, kind: input, shape index: {}]
  %s1 = inlined_call_operand.hbm [shape: f32[128,128], index: 1, kind: input, shape index: {}]
  %s2 = inlined_call_operand.hbm [shape: f32[8,128], index: 2, kind: output, shape index: {}]
  %s3 = sld [smem:[#allocation0]]
  $region34: #{tpu_custom_call.1} parent=0
    _
  %s5 = ssub.s32 1, %s3
  %s6 = scalar_select 0, %s5, %s3
  $region1: #{tpu_custom_call.1} parent=0
    #allocation3 [shape = 'u8[65536]{0}', space=vmem, size = 0x10000, scoped, tag = 'input window, operand 0, single buffered']
    #allocation4 [shape = 's32[1]{0}', space=sflag, size = 0x4, scoped, tag = 'scoped memory for tpu_custom_call.1']
    #allocation5 [shape = 's32[1]{0}', space=sflag, size = 0x4, scoped, tag = 'scoped memory for tpu_custom_call.1']
    #allocation6 [shape = 'u8[65536]{0}', space=vmem, size = 0x10000, scoped, tag = 'input window, operand 1, single buffered']
    #allocation7 [shape = 's32[1]{0}', space=sflag, size = 0x4, scoped, tag = 'scoped memory for tpu_custom_call.1']
    #allocation8 [shape = 'u8[4096]{0}', space=vmem, size = 0x1000, scoped, tag = 'output window, operand 0, single buffered']
    %7 = vsyncpa [#allocation4], 0
    %8 = vsyncpa [#allocation7], 0
    %9 = vsyncpa [#allocation5], 0
    // Predicated region
    $region2: #{tpu_custom_call.1} parent=1 // pred_check
      _
    $region3: #{tpu_custom_call.1} parent=1 // pred_check_branch
      %11 = sbr.rel (0) target = $region5
    $region4: #{tpu_custom_call.1} parent=1 // pred_region
      %s12 = sadd.s32 0, 0
      %s13 = smul.u32 16, %s12
      %s15 = ssub.s32 2048, 2048
      %16 = vsyncadd [#allocation4], %s15
      %s17 = smul.addr %s13, 128
      %s18 = scalar_lea.hbm %s0, %s17
      %s19 = sshll.u32 [#allocation3], 4
      %s20 = int_to_ptr.vmem [resolvable:$true] %s19
      %25 = dma.hbm_to_vmem [thread:$0]  %s18, 2048, %s20, [#allocation4], 128, 128, 8
    $region5: #{tpu_custom_call.1} parent=1 // pred_fallthru
      _
    // Predicated region
    $region6: #{tpu_custom_call.1} parent=1 // pred_check
      _
    $region7: #{tpu_custom_call.1} parent=1 // pred_check_branch
      %27 = sbr.rel (0) target = $region9
    $region8: #{tpu_custom_call.1} parent=1 // pred_region
      %s28 = sadd.s32 0, 0
      %s29 = smul.u32 16, %s28
      %s31 = ssub.s32 2048, 2048
      %32 = vsyncadd [#allocation7], %s31
      %s33 = smul.addr %s29, 128
      %s34 = scalar_lea.hbm %s1, %s33
      %s35 = sshll.u32 [#allocation6], 4
      %s36 = int_to_ptr.vmem [resolvable:$true] %s35
      %41 = dma.hbm_to_vmem [thread:$0]  %s34, 2048, %s36, [#allocation7], 128, 128, 8
    $region9: #{tpu_custom_call.1} parent=1 // pred_fallthru
      _
    // Predicated region
    $region10: #{tpu_custom_call.1} parent=1 // pred_check
      _
    $region11: #{tpu_custom_call.1} parent=1 // pred_check_branch
      %43 = sbr.rel (0) target = $region13
    $region12: #{tpu_custom_call.1} parent=1 // pred_region
      %44 = dma.done [#allocation4], 2048
    $region13: #{tpu_custom_call.1} parent=1 // pred_fallthru
      _
    // Predicated region
    $region14: #{tpu_custom_call.1} parent=1 // pred_check
      _
    $region15: #{tpu_custom_call.1} parent=1 // pred_check_branch
      %46 = sbr.rel (0) target = $region17
    $region16: #{tpu_custom_call.1} parent=1 // pred_region
      %47 = dma.done [#allocation7], 2048
    $region17: #{tpu_custom_call.1} parent=1 // pred_fallthru
      _
    %s48 = sadd.s32 0, 0
    %s49 = smul.u32 16, %s48
    %s50 = sadd.s32 0, 0
    %s51 = smul.u32 16, %s50
    %p52 = scmp.eq.s32.totalorder 0, 0
    // Predicated region
    $region18: #{tpu_custom_call.1} parent=1 // pred_check
      %p53 = pneg %p52
    $region19: #{tpu_custom_call.1} parent=1 // pred_check_branch
      %55 = sbr.rel (%p53) target = $region21
    $region20: #{tpu_custom_call.1} parent=1 // pred_region
      %56 = vst [vmem:[#allocation2] sm:$0xff] 0.0
    $region21: #{tpu_custom_call.1} parent=1 // pred_fallthru
      _
    %v57 = vld [vmem:[#allocation3] sm:$0xff]
    %v58 = vld [vmem:[#allocation3 + $0x8] sm:$0xff]
    %v59 = vld [vmem:[#allocation3 + $0x10] sm:$0xff]
    %v60 = vld [vmem:[#allocation3 + $0x18] sm:$0xff]
    %v61 = vld [vmem:[#allocation3 + $0x20] sm:$0xff]
    %v62 = vld [vmem:[#allocation3 + $0x28] sm:$0xff]
    %v63 = vld [vmem:[#allocation3 + $0x30] sm:$0xff]
    %v64 = vld [vmem:[#allocation3 + $0x38] sm:$0xff]
    %v65 = vld [vmem:[#allocation3 + $0x40] sm:$0xff]
    %v66 = vld [vmem:[#allocation3 + $0x48] sm:$0xff]
    %v67 = vld [vmem:[#allocation3 + $0x50] sm:$0xff]
    %v68 = vld [vmem:[#allocation3 + $0x58] sm:$0xff]
    %v69 = vld [vmem:[#allocation3 + $0x60] sm:$0xff]
    %v70 = vld [vmem:[#allocation3 + $0x68] sm:$0xff]
    %v71 = vld [vmem:[#allocation3 + $0x70] sm:$0xff]
    %v72 = vld [vmem:[#allocation3 + $0x78] sm:$0xff]
    %v73 = vld [vmem:[#allocation6] sm:$0xff]
    %v74 = vld [vmem:[#allocation6 + $0x8] sm:$0xff]
    %v75 = vld [vmem:[#allocation6 + $0x10] sm:$0xff]
    %v76 = vld [vmem:[#allocation6 + $0x18] sm:$0xff]
    %v77 = vld [vmem:[#allocation6 + $0x20] sm:$0xff]
    %v78 = vld [vmem:[#allocation6 + $0x28] sm:$0xff]
    %v79 = vld [vmem:[#allocation6 + $0x30] sm:$0xff]
    %v80 = vld [vmem:[#allocation6 + $0x38] sm:$0xff]
    %v81 = vld [vmem:[#allocation6 + $0x40] sm:$0xff]
    %v82 = vld [vmem:[#allocation6 + $0x48] sm:$0xff]
    %v83 = vld [vmem:[#allocation6 + $0x50] sm:$0xff]
    %v84 = vld [vmem:[#allocation6 + $0x58] sm:$0xff]
    %v85 = vld [vmem:[#allocation6 + $0x60] sm:$0xff]
    %v86 = vld [vmem:[#allocation6 + $0x68] sm:$0xff]
    %v87 = vld [vmem:[#allocation6 + $0x70] sm:$0xff]
    %v88 = vld [vmem:[#allocation6 + $0x78] sm:$0xff]
    %v89 = vsub.f32 %v57, %v73
    %v90 = vsub.f32 %v58, %v74
    %v91 = vsub.f32 %v59, %v75
    %v92 = vsub.f32 %v60, %v76
    %v93 = vsub.f32 %v61, %v77
    %v94 = vsub.f32 %v62, %v78
    %v95 = vsub.f32 %v63, %v79
    %v96 = vsub.f32 %v64, %v80
    %v97 = vsub.f32 %v65, %v81
    %v98 = vsub.f32 %v66, %v82
    %v99 = vsub.f32 %v67, %v83
    %v100 = vsub.f32 %v68, %v84
    %v101 = vsub.f32 %v69, %v85
    %v102 = vsub.f32 %v70, %v86
    %v103 = vsub.f32 %v71, %v87
    %v104 = vsub.f32 %v72, %v88
    %v105 = vand.u32 2147483647, %v89
    %v106 = vand.u32 2147483647, %v90
    %v107 = vand.u32 2147483647, %v91
    %v108 = vand.u32 2147483647, %v92
    %v109 = vand.u32 2147483647, %v93
    %v110 = vand.u32 2147483647, %v94
    %v111 = vand.u32 2147483647, %v95
    %v112 = vand.u32 2147483647, %v96
    %v113 = vand.u32 2147483647, %v97
    %v114 = vand.u32 2147483647, %v98
    %v115 = vand.u32 2147483647, %v99
    %v116 = vand.u32 2147483647, %v100
    %v117 = vand.u32 2147483647, %v101
    %v118 = vand.u32 2147483647, %v102
    %v119 = vand.u32 2147483647, %v103
    %v120 = vand.u32 2147483647, %v104
    %v121 = vmin.f32 %v105, 1.0
    %v122 = vmin.f32 %v106, 1.0
    %v123 = vmin.f32 %v107, 1.0
    %v124 = vmin.f32 %v108, 1.0
    %v125 = vmin.f32 %v109, 1.0
    %v126 = vmin.f32 %v110, 1.0
    %v127 = vmin.f32 %v111, 1.0
    %v128 = vmin.f32 %v112, 1.0
    %v129 = vmin.f32 %v113, 1.0
    %v130 = vmin.f32 %v114, 1.0
    %v131 = vmin.f32 %v115, 1.0
    %v132 = vmin.f32 %v116, 1.0
    %v133 = vmin.f32 %v117, 1.0
    %v134 = vmin.f32 %v118, 1.0
    %v135 = vmin.f32 %v119, 1.0
    %v136 = vmin.f32 %v120, 1.0
    %v137 = vmul.f32 %v121, 0.5
    %v138 = vmul.f32 %v122, 0.5
    %v139 = vmul.f32 %v123, 0.5
    %v140 = vmul.f32 %v124, 0.5
    %v141 = vmul.f32 %v125, 0.5
    %v142 = vmul.f32 %v126, 0.5
    %v143 = vmul.f32 %v127, 0.5
    %v144 = vmul.f32 %v128, 0.5
    %v145 = vmul.f32 %v129, 0.5
    %v146 = vmul.f32 %v130, 0.5
    %v147 = vmul.f32 %v131, 0.5
    %v148 = vmul.f32 %v132, 0.5
    %v149 = vmul.f32 %v133, 0.5
    %v150 = vmul.f32 %v134, 0.5
    %v151 = vmul.f32 %v135, 0.5
    %v152 = vmul.f32 %v136, 0.5
    %v153 = vsub.f32 %v105, %v137
    %v154 = vsub.f32 %v106, %v138
    %v155 = vsub.f32 %v107, %v139
    %v156 = vsub.f32 %v108, %v140
    %v157 = vsub.f32 %v109, %v141
    %v158 = vsub.f32 %v110, %v142
    %v159 = vsub.f32 %v111, %v143
    %v160 = vsub.f32 %v112, %v144
    %v161 = vsub.f32 %v113, %v145
    %v162 = vsub.f32 %v114, %v146
    %v163 = vsub.f32 %v115, %v147
    %v164 = vsub.f32 %v116, %v148
    %v165 = vsub.f32 %v117, %v149
    %v166 = vsub.f32 %v118, %v150
    %v167 = vsub.f32 %v119, %v151
    %v168 = vsub.f32 %v120, %v152
    %v169 = vmul.f32 %v121, %v153
    %v170 = vmul.f32 %v122, %v154
    %v171 = vmul.f32 %v123, %v155
    %v172 = vmul.f32 %v124, %v156
    %v173 = vmul.f32 %v125, %v157
    %v174 = vmul.f32 %v126, %v158
    %v175 = vmul.f32 %v127, %v159
    %v176 = vmul.f32 %v128, %v160
    %v177 = vmul.f32 %v129, %v161
    %v178 = vmul.f32 %v130, %v162
    %v179 = vmul.f32 %v131, %v163
    %v180 = vmul.f32 %v132, %v164
    %v181 = vmul.f32 %v133, %v165
    %v182 = vmul.f32 %v134, %v166
    %v183 = vmul.f32 %v135, %v167
    %v184 = vmul.f32 %v136, %v168
    %v185 = vld [vmem:[#allocation2] sm:$0xff]
    %v186 = vadd.f32 %v169, %v170
    %v187 = vadd.f32 %v186, %v171
    %v188 = vadd.f32 %v187, %v172
    %v189 = vadd.f32 %v188, %v173
    %v190 = vadd.f32 %v189, %v174
    %v191 = vadd.f32 %v190, %v175
    %v192 = vadd.f32 %v191, %v176
    %v193 = vadd.f32 %v192, %v177
    %v194 = vadd.f32 %v193, %v178
    %v195 = vadd.f32 %v194, %v179
    %v196 = vadd.f32 %v195, %v180
    %v197 = vadd.f32 %v196, %v181
    %v198 = vadd.f32 %v197, %v182
    %v199 = vadd.f32 %v198, %v183
    %v200 = vadd.f32 %v199, %v184
    %v201 = vadd.f32 %v185, %v200
    %202 = vst [vmem:[#allocation2] sm:$0xff] %v201
    // Predicated region
    $region22: #{tpu_custom_call.1} parent=1 // pred_check
      %p203 = pneg %p52
    $region23: #{tpu_custom_call.1} parent=1 // pred_check_branch
      %205 = sbr.rel (%p203) target = $region25
    $region24: #{tpu_custom_call.1} parent=1 // pred_region
      %v206 = vld [vmem:[#allocation2] sm:$0xff]
      %207 = vst [vmem:[#allocation8] sm:$0xff] %v206
    $region25: #{tpu_custom_call.1} parent=1 // pred_fallthru
      _
    // Predicated region
    $region26: #{tpu_custom_call.1} parent=1 // pred_check
      _
    $region27: #{tpu_custom_call.1} parent=1 // pred_check_branch
      %209 = sbr.rel (0) target = $region29
    $region28: #{tpu_custom_call.1} parent=1 // pred_region
      %s211 = ssub.s32 128, 128
      %212 = vsyncadd [#allocation5], %s211
      %s214 = sshll.u32 [#allocation8], 4
      %s215 = int_to_ptr.vmem [resolvable:$true] %s214
      %217 = dma.vmem_to_hbm [thread:$0]  %s215, 128, %s2, [#allocation5]
    $region29: #{tpu_custom_call.1} parent=1 // pred_fallthru
      _
    // Predicated region
    $region30: #{tpu_custom_call.1} parent=1 // pred_check
      _
    $region31: #{tpu_custom_call.1} parent=1 // pred_check_branch
      %219 = sbr.rel (0) target = $region33
    $region32: #{tpu_custom_call.1} parent=1 // pred_region
      %220 = dma.done [#allocation5], 128
    $region33: #{tpu_custom_call.1} parent=1 // pred_fallthru
      _
    %221 = vsyncpa [#allocation4], 1
    %222 = vsyncpa [#allocation7], 1
    %223 = vsyncpa [#allocation5], 1

</llo_original>
